<compile_context>
chip_gen: v7x
topology: tpu7x:2x2x1
jax: 0.10.0
libtpu: 0.0.40
codegen_flags: <defaults>
</compile_context>

<pallas_src>
import jax
import jax.numpy as jnp
from jax.experimental import pallas as pl
from jax.experimental.pallas import tpu as pltpu


def _round_up(x, m):
    return ((x + m - 1) // m) * m


_TILE_B_MAX = 512    # sublane-aligned (multiple of 8)
_TILE_N_MAX = 1024   # lane-aligned   (multiple of 128)


def place_cell_kernel(scale_ref, pos_ref, pf_t_ref, out_ref):
    """Computes one (TILE_B, TILE_N) tile of place-cell activations.

    scale_ref: (1,)            SMEM  precomputed -1/(2*sigma^2)
    pos_ref:   (TILE_B, 2)     VMEM  positions (batch on sublanes)
    pf_t_ref:  (2, TILE_N)     VMEM  place fields transposed (cells on lanes)
    out_ref:   (TILE_B, TILE_N) VMEM
    """
    inv = scale_ref[0]                      # scalar: -1 / (2 * sigma^2)

    px = pos_ref[:, 0:1]                    # (TILE_B, 1)
    py = pos_ref[:, 1:2]                    # (TILE_B, 1)
    fx = pf_t_ref[0:1, :]                   # (1, TILE_N)
    fy = pf_t_ref[1:2, :]                   # (1, TILE_N)

    dx = px - fx                            # (TILE_B, TILE_N) broadcast
    dy = py - fy
    squared_dist = dx * dx + dy * dy

    # single vmul per element + EUP exp (no per-element divide / negate)
    out_ref[...] = jnp.exp(squared_dist * inv)


def prepare_place_cell_params(place_fields, sigma):
    """One-time parameter prep (hoisted out of the hot forward path).

    Transposes place_fields to (2, N_pad) with N padded to a lane-aligned
    multiple, and folds sigma into the scalar -1/(2*sigma^2).
    """
    place_fields = jnp.asarray(place_fields, jnp.float32)
    n = place_fields.shape[0]
    tile_n = min(_TILE_N_MAX, _round_up(max(n, 1), 128))
    n_pad = _round_up(max(n, 1), tile_n)
    pf_t = jnp.zeros((2, n_pad), jnp.float32).at[:, :n].set(place_fields.T)
    sigma = jnp.asarray(sigma, jnp.float32)
    inv_scale = jnp.reshape(-1.0 / (2.0 * sigma * sigma), (1,))
    return {"pf_t": pf_t, "inv_scale": inv_scale, "num_place_cells": n}


def place_cell_forward(pos, params):
    """pos: (B, 2) float -> (B, N) activations."""
    pf_t = params["pf_t"]                   # (2, N_pad)
    inv_scale = params["inv_scale"]         # (1,)
    n = params["num_place_cells"]

    pos = jnp.asarray(pos, jnp.float32)
    b = pos.shape[0]
    n_pad = pf_t.shape[1]

    tile_b = min(_TILE_B_MAX, _round_up(max(b, 1), 8))
    b_pad = _round_up(max(b, 1), tile_b)
    tile_n = min(_TILE_N_MAX, n_pad)        # n_pad is a multiple of tile_n

    if b_pad != b:
        pos = jnp.zeros((b_pad, 2), jnp.float32).at[:b, :].set(pos)

    grid = (b_pad // tile_b, n_pad // tile_n)

    out = pl.pallas_call(
        place_cell_kernel,
        out_shape=jax.ShapeDtypeStruct((b_pad, n_pad), jnp.float32),
        grid=grid,
        in_specs=[
            pl.BlockSpec(memory_space=pltpu.SMEM),              # inv_scale scalar
            pl.BlockSpec((tile_b, 2), lambda i, j: (i, 0)),     # pos tile (by i)
            pl.BlockSpec((2, tile_n), lambda i, j: (0, j)),     # pf_t tile (by j)
        ],
        out_specs=pl.BlockSpec((tile_b, tile_n), lambda i, j: (i, j)),
        compiler_params=pltpu.CompilerParams(
            dimension_semantics=("parallel", "parallel"),
            vmem_limit_bytes=32 << 20,
        ),
    )(inv_scale, pos, pf_t)

    return out[:b, :n]


if __name__ == "__main__":
    # Module config (input_size is unused in forward, kept for parity).
    input_size = 2
    num_place_cells = 128
    batch = 8

    key = jax.random.PRNGKey(0)
    k_pf, k_pos = jax.random.split(key)

    # Deterministic parameter init, mirroring torch.rand(...)*2 - 1 and sigma=0.1
    place_fields = jax.random.uniform(
        k_pf, (num_place_cells, 2), dtype=jnp.float32) * 2.0 - 1.0
    sigma = jnp.float32(0.1)

    # Example positions in [-1, 1)
    pos = jax.random.uniform(k_pos, (batch, 2), dtype=jnp.float32) * 2.0 - 1.0

    # Parameter prep happens once at "module init", not per forward call.
    params = prepare_place_cell_params(place_fields, sigma)

    out = place_cell_forward(pos, params)
    out = jax.block_until_ready(out)

    # Pure-JAX reference (same math as the PyTorch forward).
    sq = jnp.sum((pos[:, None, :] - place_fields[None, :, :]) ** 2, axis=2)
    ref = jnp.exp(-sq / (2.0 * sigma ** 2))
    assert out.shape == (batch, num_place_cells)
    assert jnp.allclose(out, ref, atol=1e-5, rtol=1e-5)

    print("KERNEL_OK")
</pallas_src>

<mosaic_0001>
module attributes {stable_mosaic.version = 11 : i64} {
  func.func @place_cell_kernel(%arg0: i32, %arg1: i32, %arg2: memref<1xf32, #tpu.memory_space<smem>>, %arg3: memref<8x2xf32, #tpu.memory_space<vmem>>, %arg4: memref<2x128xf32, #tpu.memory_space<vmem>>, %arg5: memref<8x128xf32, #tpu.memory_space<vmem>>) attributes {dimension_semantics = [#tpu.dimension_semantics<parallel>, #tpu.dimension_semantics<parallel>], iteration_bounds = array<i64: 1, 1>, scalar_prefetch = 0 : i64, scratch_operands = 0 : i64, tpu.core_type = #tpu.core_type<tc>, window_params = [{transform_indices = @transform_0, window_bounds = array<i64: 1>}, {transform_indices = @transform_1, window_bounds = array<i64: 8, 2>}, {transform_indices = @transform_2, window_bounds = array<i64: 2, 128>}, {transform_indices = @transform_3, window_bounds = array<i64: 8, 128>}]} {
    %c0 = arith.constant 0 : index
    %0 = memref.load %arg2[%c0] : memref<1xf32, #tpu.memory_space<smem>>
    %c0_0 = arith.constant 0 : index
    %c0_1 = arith.constant 0 : index
    %1 = vector.load %arg3[%c0_0, %c0_1] : memref<8x2xf32, #tpu.memory_space<vmem>>, vector<8x1xf32>
    %c0_2 = arith.constant 0 : index
    %c1 = arith.constant 1 : index
    %2 = vector.load %arg3[%c0_2, %c1] : memref<8x2xf32, #tpu.memory_space<vmem>>, vector<8x1xf32>
    %c0_3 = arith.constant 0 : index
    %c0_4 = arith.constant 0 : index
    %3 = vector.load %arg4[%c0_3, %c0_4] : memref<2x128xf32, #tpu.memory_space<vmem>>, vector<1x128xf32>
    %c1_5 = arith.constant 1 : index
    %c0_6 = arith.constant 0 : index
    %4 = vector.load %arg4[%c1_5, %c0_6] : memref<2x128xf32, #tpu.memory_space<vmem>>, vector<1x128xf32>
    %5 = vector.broadcast %1 : vector<8x1xf32> to vector<8x128xf32>
    %6 = vector.broadcast %3 : vector<1x128xf32> to vector<8x128xf32>
    %7 = arith.subf %5, %6 : vector<8x128xf32>
    %8 = vector.broadcast %2 : vector<8x1xf32> to vector<8x128xf32>
    %9 = vector.broadcast %4 : vector<1x128xf32> to vector<8x128xf32>
    %10 = arith.subf %8, %9 : vector<8x128xf32>
    %11 = arith.mulf %7, %7 : vector<8x128xf32>
    %12 = arith.mulf %10, %10 : vector<8x128xf32>
    %13 = arith.addf %11, %12 : vector<8x128xf32>
    %14 = vector.broadcast %0 : f32 to vector<8x128xf32>
    %15 = arith.mulf %13, %14 : vector<8x128xf32>
    %16 = math.exp %15 : vector<8x128xf32>
    %c0_7 = arith.constant 0 : index
    %c0_8 = arith.constant 0 : index
    %17 = vector.load %arg5[%c0_7, %c0_8] : memref<8x128xf32, #tpu.memory_space<vmem>>, vector<8x128xf32>
    tpu.vector_store %arg5[%c0_7, %c0_8], %16 {strides = array<i32>} : memref<8x128xf32, #tpu.memory_space<vmem>>, vector<8x128xf32>,
    return
  }
  func.func @transform_0(%arg0: i32, %arg1: i32) -> i32 {
    %c0_i32 = arith.constant 0 : i32
    %c0_i32_0 = arith.constant 0 : i32
    return %c0_i32 : i32
  }
  func.func @transform_1(%arg0: i32, %arg1: i32) -> (i32, i32) {
    %c0_i32 = arith.constant 0 : i32
    %c0_i32_0 = arith.constant 0 : i32
    return %arg0, %c0_i32 : i32, i32
  }
  func.func @transform_2(%arg0: i32, %arg1: i32) -> (i32, i32) {
    %c0_i32 = arith.constant 0 : i32
    %c0_i32_0 = arith.constant 0 : i32
    return %c0_i32, %arg1 : i32, i32
  }
  func.func @transform_3(%arg0: i32, %arg1: i32) -> (i32, i32) {
    %c0_i32 = arith.constant 0 : i32
    return %arg0, %arg1 : i32, i32
  }
}

</mosaic_0001>

<llo_original>
// kernel: tpu_custom_call.1
$region0: #{tpu_custom_call.1}
  #allocation0 [shape = 'u32[]', space=smem, size = 0x4, offset = 0x4, fixed_abs, tag = 'smem constant byte address 0x4 - core index']
  #allocation1 [shape = 'u32[144,128]{1,0:T(1,128)}', space=vmem, size = 0x12000, scoped, tag = 'internal scratch']
  #allocation2 [shape = 'f32[1]{0:T(128)S(6)}', space=smem, size = 0x200, scoped, tag = 'scoped memory for tpu_custom_call.1']
  %s0 = inlined_call_operand.<no memory space> [shape: f32[1], index: 0, kind: input, shape index: {}]
  %s1 = inlined_call_operand.vmem [shape: f32[8,2], index: 1, kind: input, shape index: {}]
  %s2 = inlined_call_operand.vmem [shape: f32[2,128], index: 2, kind: input, shape index: {}]
  %s3 = inlined_call_operand.hbm [shape: f32[8,128], index: 3, kind: output, shape index: {}]
  %s4 = sld [smem:[#allocation0]]
  $region22: #{tpu_custom_call.1} parent=0
    _
  %s6 = ssub.s32 1, %s4
  %s7 = scalar_select 0, %s6, %s4
  %8 = sst [smem:[#allocation2]] %s0
  $region1: #{tpu_custom_call.1} parent=0
    #allocation3 [shape = 'u8[4096]{0}', space=vmem, size = 0x1000, scoped, tag = 'output window, operand 0, single buffered']
    #allocation4 [shape = 's32[1]{0}', space=sflag, size = 0x4, scoped, tag = 'scoped memory for tpu_custom_call.1']
    %9 = vsyncpa [#allocation4], 0
    // Predicated region
    $region2: #{tpu_custom_call.1} parent=1 // pred_check
      _
    $region3: #{tpu_custom_call.1} parent=1 // pred_check_branch
      %11 = sbr.rel (0) target = $region5
    $region4: #{tpu_custom_call.1} parent=1 // pred_region
      _
    $region5: #{tpu_custom_call.1} parent=1 // pred_fallthru
      _
    // Predicated region
    $region6: #{tpu_custom_call.1} parent=1 // pred_check
      _
    $region7: #{tpu_custom_call.1} parent=1 // pred_check_branch
      %13 = sbr.rel (0) target = $region9
    $region8: #{tpu_custom_call.1} parent=1 // pred_region
      _
    $region9: #{tpu_custom_call.1} parent=1 // pred_fallthru
      _
    // Predicated region
    $region10: #{tpu_custom_call.1} parent=1 // pred_check
      _
    $region11: #{tpu_custom_call.1} parent=1 // pred_check_branch
      %15 = sbr.rel (0) target = $region13
    $region12: #{tpu_custom_call.1} parent=1 // pred_region
      _
    $region13: #{tpu_custom_call.1} parent=1 // pred_fallthru
      _
    %s16 = sld [smem:[#allocation2]]
    %v17 = vld [vmem:[%s1] sm:$0xff]
    %v18 = vld [vmem:[%s2] sm:$0x1]
    %v19 = vld [vmem:[%s2 + $0x1] sm:$0x1]
    %21 = vset.pattern.permute.xlu0 0
    %22 = vperm.xlu0 %21, %v17
    %v23 = vpop.permute.xlu0 %22
    %v25 = vlaneseq
    %v26 = vshrl.u32 %v25, 7
    %v27 = vsub.s32 0, %v26
    %v28 = vrot.slane %v18, %v27
    %v29 = vsub.f32 %v23, %v28
    %30 = vset.pattern.permute.xlu0 1
    %31 = vperm.xlu0 %30, %v17
    %v32 = vpop.permute.xlu0 %31
    %v34 = vlaneseq
    %v35 = vshrl.u32 %v34, 7
    %v36 = vsub.s32 0, %v35
    %v37 = vrot.slane %v19, %v36
    %v38 = vsub.f32 %v32, %v37
    %v39 = vmul.f32 %v29, %v29
    %v40 = vmul.f32 %v38, %v38
    %v41 = vadd.f32 %v39, %v40
    %v42 = vstv %s16
    %v43 = vmul.f32 %v41, %v42
    %v44 = vmul.f32 %v43, 1.442695
    %v45 = vpow.pop %v44
    %46 = vst [vmem:[#allocation3] sm:$0xff] %v45
    // Predicated region
    $region14: #{tpu_custom_call.1} parent=1 // pred_check
      _
    $region15: #{tpu_custom_call.1} parent=1 // pred_check_branch
      %48 = sbr.rel (0) target = $region17
    $region16: #{tpu_custom_call.1} parent=1 // pred_region
      %s50 = ssub.s32 128, 128
      %51 = vsyncadd [#allocation4], %s50
      %s53 = sshll.u32 [#allocation3], 4
      %s54 = int_to_ptr.vmem [resolvable:$true] %s53
      %56 = dma.vmem_to_hbm [thread:$0]  %s54, 128, %s3, [#allocation4]
    $region17: #{tpu_custom_call.1} parent=1 // pred_fallthru
      _
    // Predicated region
    $region18: #{tpu_custom_call.1} parent=1 // pred_check
      _
    $region19: #{tpu_custom_call.1} parent=1 // pred_check_branch
      %58 = sbr.rel (0) target = $region21
    $region20: #{tpu_custom_call.1} parent=1 // pred_region
      %59 = dma.done [#allocation4], 128
    $region21: #{tpu_custom_call.1} parent=1 // pred_fallthru
      _
    %60 = vsyncpa [#allocation4], 1

</llo_original>
